<compile_context>
chip_gen: v7x
topology: tpu7x:2x2x1
jax: 0.10.0
libtpu: 0.0.40
codegen_flags: <defaults>
</compile_context>

<pallas_src>
import numpy as np
import jax
import jax.numpy as jnp
from jax import lax
from jax.experimental import pallas as pl
from jax.experimental.pallas import tpu as pltpu

_TM = 128      # similarity-matrix row tile (MXU-aligned)
_TN = 256      # similarity-matrix col tile (lane-dense output; retune per gen)
_LANES = 128   # edge-score output lane block


def _round_up(x, m):
    return ((x + m - 1) // m) * m


# ---------------------------------------------------------------------------
# Kernel 1: row normalization   xn[i] = x[i] * rsqrt(||x[i]||^2)   (zero rows
# are left unchanged, matching sklearn's normalize()).
# ---------------------------------------------------------------------------
def _normalize_kernel(x_ref, out_ref):
    x = x_ref[...]                                          # [tm, D]
    nsq = jnp.sum(x * x, axis=1, keepdims=True)             # [tm, 1]
    inv = jnp.where(nsq > 0.0, lax.rsqrt(nsq), 1.0)
    out_ref[...] = x * inv


def normalize_rows_pallas(x, tm=_TM):
    n, d = x.shape
    n_pad = _round_up(n, tm)
    xp = jnp.pad(x, ((0, n_pad - n), (0, 0))) if n_pad != n else x
    out = pl.pallas_call(
        _normalize_kernel,
        out_shape=jax.ShapeDtypeStruct((n_pad, d), jnp.float32),
        grid_spec=pltpu.PrefetchScalarGridSpec(
            num_scalar_prefetch=0,
            grid=(n_pad // tm,),
            in_specs=[pl.BlockSpec((tm, d), lambda i: (i, 0))],
            out_specs=pl.BlockSpec((tm, d), lambda i: (i, 0)),
        ),
        compiler_params=pltpu.CompilerParams(
            dimension_semantics=("parallel",)),
    )(xp)
    return out[:n]


# ---------------------------------------------------------------------------
# Kernel 2: cosine matrix  S = Xn @ Xn.T  on pre-normalized features.
# 2-D output tiling; feature dim contracted directly (no transpose copy).
# ---------------------------------------------------------------------------
def _cosine_kernel(xi_ref, xj_ref, out_ref):
    out_ref[...] = lax.dot_general(
        xi_ref[...], xj_ref[...],
        dimension_numbers=(((1,), (1,)), ((), ())),
        preferred_element_type=jnp.float32,
    )


def cosine_matrix_pallas(xn, tm=_TM, tn=_TN):
    n, d = xn.shape
    n_pad = _round_up(n, max(tm, tn))
    xp = jnp.pad(xn, ((0, n_pad - n), (0, 0))) if n_pad != n else xn
    out = pl.pallas_call(
        _cosine_kernel,
        out_shape=jax.ShapeDtypeStruct((n_pad, n_pad), jnp.float32),
        grid_spec=pltpu.PrefetchScalarGridSpec(
            num_scalar_prefetch=0,
            grid=(n_pad // tm, n_pad // tn),
            in_specs=[
                pl.BlockSpec((tm, d), lambda i, j: (i, 0)),
                pl.BlockSpec((tn, d), lambda i, j: (j, 0)),
            ],
            out_specs=pl.BlockSpec((tm, tn), lambda i, j: (i, j)),
        ),
        compiler_params=pltpu.CompilerParams(
            dimension_semantics=("parallel", "parallel")),
    )(xp, xp)
    # TODO(synk): for very large D (>= ~2048) add a K grid axis with a VMEM
    # f32 accumulator (init/finalize via pl.when) to bound per-tile VMEM.
    return out[:n, :n]


# ---------------------------------------------------------------------------
# Kernel 3: edge scores  out[e] = <xn[src[e]], xn[dst[e]]>  (== S[src, dst]).
# Scalar-prefetched indices drive pl.Element row gathers; the result is
# packed into lane-dense (1, 128) output blocks.
# ---------------------------------------------------------------------------
def _edge_score_kernel(src_ref, dst_ref, xs_ref, xd_ref, out_ref):
    del src_ref, dst_ref                       # only used in the index maps
    e = pl.program_id(0)
    lane_in_blk = e % _LANES

    @pl.when(lane_in_blk == 0)
    def _():                                   # entering a new output block
        out_ref[...] = jnp.zeros_like(out_ref)

    s = jnp.sum(xs_ref[...] * xd_ref[...], axis=1, keepdims=True)   # (1, 1)
    lane = lax.broadcasted_iota(jnp.int32, (1, _LANES), 1)
    out_ref[...] = jnp.where(lane == lane_in_blk, s, out_ref[...])


def edge_scores_pallas(xn, edges):
    n, d = xn.shape
    e_cnt = int(edges.shape[0])
    e_pad = _round_up(e_cnt, _LANES)
    src = edges[:, 0].astype(jnp.int32)
    dst = edges[:, 1].astype(jnp.int32)
    out = pl.pallas_call(
        _edge_score_kernel,
        out_shape=jax.ShapeDtypeStruct((1, e_pad), jnp.float32),
        grid_spec=pltpu.PrefetchScalarGridSpec(
            num_scalar_prefetch=2,
            grid=(e_cnt,),
            in_specs=[
                pl.BlockSpec((pl.Element(1), d),
                             lambda e, src, dst: (src[e], 0)),
                pl.BlockSpec((pl.Element(1), d),
                             lambda e, src, dst: (dst[e], 0)),
            ],
            out_specs=pl.BlockSpec((1, _LANES),
                                   lambda e, src, dst: (0, e // _LANES)),
        ),
        compiler_params=pltpu.CompilerParams(
            dimension_semantics=("arbitrary",)),
    )(src, dst, xn, xn)
    # TODO(synk): for very large edge lists, batch many edges per grid step
    # with a manual DMA row gather instead of one edge per step.
    return out[0, :e_cnt]


# ---------------------------------------------------------------------------
# Module equivalent
# ---------------------------------------------------------------------------
class LeoProximityPallas:
    """JAX/Pallas port of leo_proximity (hetero=False / cosine path)."""

    def __init__(self, features, hetero=False, attack_adj=None):
        self.model_name = "jaccard"
        self._loss = lambda x, y: 0.0
        if hetero:
            # TODO(synk): adamic_adar_fn is a sparse Python set-intersection
            # loop over a scipy COO adjacency; no clean Pallas equivalent.
            raise NotImplementedError("hetero (adamic-adar) path not ported")
        self.features = jnp.asarray(features, dtype=jnp.float32)
        self._xn = normalize_rows_pallas(self.features)     # [N, D] normalized
        self.score_all = cosine_matrix_pallas(self._xn)     # [N, N] cosine sim

    def forward(self, inputs, edges):
        # forward == score_all[edges[:, 0], edges[:, 1]]; computed as
        # <xn[src], xn[dst]> (same value) so the full N x N matrix never has
        # to be resident in VMEM for the gather.
        del inputs  # unused in the original forward as well
        return edge_scores_pallas(self._xn, jnp.asarray(edges))

    def get_embedding(self, edges):
        edges = jnp.asarray(edges)
        return (self.features[edges[:, 0], :], self.features[edges[:, 1], :])


if __name__ == "__main__":
    key = jax.random.PRNGKey(0)
    k_feat, k_edge = jax.random.split(key)

    N, D, E = 16, 32, 8
    features = jax.random.normal(k_feat, (N, D), dtype=jnp.float32)
    edges = jax.random.randint(k_edge, (E, 2), 0, N, dtype=jnp.int32)

    model = LeoProximityPallas(features, hetero=False)
    out = model.forward(None, edges)
    out = jax.block_until_ready(out)

    # Reference check (plain JAX, high-precision matmul).
    norms = jnp.sqrt(jnp.sum(features * features, axis=1, keepdims=True))
    xn_ref = features / jnp.where(norms == 0.0, 1.0, norms)
    ref_scores = jnp.dot(xn_ref, xn_ref.T, precision=lax.Precision.HIGHEST)
    ref = ref_scores[edges[:, 0], edges[:, 1]]

    np.testing.assert_allclose(np.asarray(model.score_all),
                               np.asarray(ref_scores), rtol=1e-4, atol=1e-5)
    np.testing.assert_allclose(np.asarray(out), np.asarray(ref),
                               rtol=1e-4, atol=1e-5)

    print("KERNEL_OK")
</pallas_src>

<mosaic_0001>
module attributes {stable_mosaic.version = 11 : i64} {
  func.func @_normalize_kernel(%arg0: i32, %arg1: memref<128x32xf32, #tpu.memory_space<vmem>>, %arg2: memref<128x32xf32, #tpu.memory_space<vmem>>) attributes {dimension_semantics = [#tpu.dimension_semantics<parallel>], iteration_bounds = array<i64: 1>, scalar_prefetch = 0 : i64, scratch_operands = 0 : i64, tpu.core_type = #tpu.core_type<tc>, window_params = [{transform_indices = @transform_0, window_bounds = array<i64: 128, 32>}, {transform_indices = @transform_1, window_bounds = array<i64: 128, 32>}]} {
    %c0 = arith.constant 0 : index
    %c0_0 = arith.constant 0 : index
    %0 = vector.load %arg1[%c0, %c0_0] : memref<128x32xf32, #tpu.memory_space<vmem>>, vector<128x32xf32>
    %1 = arith.mulf %0, %0 : vector<128x32xf32>
    %cst = arith.constant dense<0.000000e+00> : vector<128xf32>
    %2 = vector.multi_reduction <add>, %1, %cst [1] : vector<128x32xf32> to vector<128xf32>
    %3 = vector.shape_cast %2 : vector<128xf32> to vector<128x1xf32>
    %cst_1 = arith.constant 0.000000e+00 : f32
    %4 = vector.broadcast %cst_1 : f32 to vector<128x1xf32>
    %5 = arith.cmpf ogt, %3, %4 : vector<128x1xf32>
    %6 = math.rsqrt %3 : vector<128x1xf32>
    %cst_2 = arith.constant 1.000000e+00 : f32
    %7 = vector.broadcast %cst_2 : f32 to vector<128x1xf32>
    %8 = arith.select %5, %6, %7 : vector<128x1xi1>, vector<128x1xf32>
    %9 = vector.broadcast %8 : vector<128x1xf32> to vector<128x32xf32>
    %10 = arith.mulf %0, %9 : vector<128x32xf32>
    %c0_3 = arith.constant 0 : index
    %c0_4 = arith.constant 0 : index
    %11 = vector.load %arg2[%c0_3, %c0_4] : memref<128x32xf32, #tpu.memory_space<vmem>>, vector<128x32xf32>
    tpu.vector_store %arg2[%c0_3, %c0_4], %10 {strides = array<i32>} : memref<128x32xf32, #tpu.memory_space<vmem>>, vector<128x32xf32>,
    return
  }
  func.func @transform_0(%arg0: i32) -> (i32, i32) {
    %c0_i32 = arith.constant 0 : i32
    %c0_i32_0 = arith.constant 0 : i32
    return %arg0, %c0_i32 : i32, i32
  }
  func.func @transform_1(%arg0: i32) -> (i32, i32) {
    %c0_i32 = arith.constant 0 : i32
    %c0_i32_0 = arith.constant 0 : i32
    return %arg0, %c0_i32 : i32, i32
  }
}

</mosaic_0001>

<llo_original>
// kernel: tpu_custom_call.1
$region0: #{tpu_custom_call.1}
  #allocation0 [shape = 'u32[]', space=smem, size = 0x4, offset = 0x4, fixed_abs, tag = 'smem constant byte address 0x4 - core index']
  #allocation1 [shape = 'u32[144,128]{1,0:T(1,128)}', space=vmem, size = 0x12000, scoped, tag = 'internal scratch']
  %s0 = inlined_call_operand.vmem [shape: f32[128,32], index: 0, kind: input, shape index: {}]
  %s1 = inlined_call_operand.vmem [shape: f32[128,32], index: 1, kind: output, shape index: {}]
  %s2 = sld [smem:[#allocation0]]
  $region14: #{tpu_custom_call.1} parent=0
    _
  %s4 = ssub.s32 1, %s2
  %s5 = scalar_select 0, %s4, %s2
  // Predicated region
  $region2: #{tpu_custom_call.1} parent=0 // pred_check
    _
  $region3: #{tpu_custom_call.1} parent=0 // pred_check_branch
    %7 = sbr.rel (0) target = $region5
  $region4: #{tpu_custom_call.1} parent=0 // pred_region
    _
  $region5: #{tpu_custom_call.1} parent=0 // pred_fallthru
    _
  %v8 = vld [vmem:[%s0] sm:$0xff]
  %v9 = vld [vmem:[%s0 + $0x8] sm:$0xff]
  %v10 = vld [vmem:[%s0 + $0x10] sm:$0xff]
  %v11 = vld [vmem:[%s0 + $0x18] sm:$0xff]
  %v12 = vld [vmem:[%s0 + $0x20] sm:$0xff]
  %v13 = vld [vmem:[%s0 + $0x28] sm:$0xff]
  %v14 = vld [vmem:[%s0 + $0x30] sm:$0xff]
  %v15 = vld [vmem:[%s0 + $0x38] sm:$0xff]
  %v16 = vld [vmem:[%s0 + $0x40] sm:$0xff]
  %v17 = vld [vmem:[%s0 + $0x48] sm:$0xff]
  %v18 = vld [vmem:[%s0 + $0x50] sm:$0xff]
  %v19 = vld [vmem:[%s0 + $0x58] sm:$0xff]
  %v20 = vld [vmem:[%s0 + $0x60] sm:$0xff]
  %v21 = vld [vmem:[%s0 + $0x68] sm:$0xff]
  %v22 = vld [vmem:[%s0 + $0x70] sm:$0xff]
  %v23 = vld [vmem:[%s0 + $0x78] sm:$0xff]
  %v24 = vmul.f32 %v8, %v8
  %v25 = vmul.f32 %v9, %v9
  %v26 = vmul.f32 %v10, %v10
  %v27 = vmul.f32 %v11, %v11
  %v28 = vmul.f32 %v12, %v12
  %v29 = vmul.f32 %v13, %v13
  %v30 = vmul.f32 %v14, %v14
  %v31 = vmul.f32 %v15, %v15
  %v32 = vmul.f32 %v16, %v16
  %v33 = vmul.f32 %v17, %v17
  %v34 = vmul.f32 %v18, %v18
  %v35 = vmul.f32 %v19, %v19
  %v36 = vmul.f32 %v20, %v20
  %v37 = vmul.f32 %v21, %v21
  %v38 = vmul.f32 %v22, %v22
  %v39 = vmul.f32 %v23, %v23
  %vm40 = vcmask 261120
  %v41 = vsel %vm40, %v24, 0.0
  %42 = vadd.xlane.f32.xlu0 %v41
  %v43 = vpop.xlane.xlu0 %42
  %v44 = vsel %vm40, %v25, 0.0
  %45 = vadd.xlane.f32.xlu0 %v44
  %v46 = vpop.xlane.xlu0 %45
  %v47 = vsel %vm40, %v26, 0.0
  %48 = vadd.xlane.f32.xlu0 %v47
  %v49 = vpop.xlane.xlu0 %48
  %v50 = vsel %vm40, %v27, 0.0
  %51 = vadd.xlane.f32.xlu0 %v50
  %v52 = vpop.xlane.xlu0 %51
  %v53 = vsel %vm40, %v28, 0.0
  %54 = vadd.xlane.f32.xlu0 %v53
  %v55 = vpop.xlane.xlu0 %54
  %v56 = vsel %vm40, %v29, 0.0
  %57 = vadd.xlane.f32.xlu0 %v56
  %v58 = vpop.xlane.xlu0 %57
  %v59 = vsel %vm40, %v30, 0.0
  %60 = vadd.xlane.f32.xlu0 %v59
  %v61 = vpop.xlane.xlu0 %60
  %v62 = vsel %vm40, %v31, 0.0
  %63 = vadd.xlane.f32.xlu0 %v62
  %v64 = vpop.xlane.xlu0 %63
  %v65 = vsel %vm40, %v32, 0.0
  %66 = vadd.xlane.f32.xlu0 %v65
  %v67 = vpop.xlane.xlu0 %66
  %v68 = vsel %vm40, %v33, 0.0
  %69 = vadd.xlane.f32.xlu0 %v68
  %v70 = vpop.xlane.xlu0 %69
  %v71 = vsel %vm40, %v34, 0.0
  %72 = vadd.xlane.f32.xlu0 %v71
  %v73 = vpop.xlane.xlu0 %72
  %v74 = vsel %vm40, %v35, 0.0
  %75 = vadd.xlane.f32.xlu0 %v74
  %v76 = vpop.xlane.xlu0 %75
  %v77 = vsel %vm40, %v36, 0.0
  %78 = vadd.xlane.f32.xlu0 %v77
  %v79 = vpop.xlane.xlu0 %78
  %v80 = vsel %vm40, %v37, 0.0
  %81 = vadd.xlane.f32.xlu0 %v80
  %v82 = vpop.xlane.xlu0 %81
  %v83 = vsel %vm40, %v38, 0.0
  %84 = vadd.xlane.f32.xlu0 %v83
  %v85 = vpop.xlane.xlu0 %84
  %v86 = vsel %vm40, %v39, 0.0
  %87 = vadd.xlane.f32.xlu0 %v86
  %v88 = vpop.xlane.xlu0 %87
  %vm89 = vcmp.gt.f32.partialorder %v43, 0.0
  %vm90 = vcmp.gt.f32.partialorder %v46, 0.0
  %vm91 = vcmp.gt.f32.partialorder %v49, 0.0
  %vm92 = vcmp.gt.f32.partialorder %v52, 0.0
  %vm93 = vcmp.gt.f32.partialorder %v55, 0.0
  %vm94 = vcmp.gt.f32.partialorder %v58, 0.0
  %vm95 = vcmp.gt.f32.partialorder %v61, 0.0
  %vm96 = vcmp.gt.f32.partialorder %v64, 0.0
  %vm97 = vcmp.gt.f32.partialorder %v67, 0.0
  %vm98 = vcmp.gt.f32.partialorder %v70, 0.0
  %vm99 = vcmp.gt.f32.partialorder %v73, 0.0
  %vm100 = vcmp.gt.f32.partialorder %v76, 0.0
  %vm101 = vcmp.gt.f32.partialorder %v79, 0.0
  %vm102 = vcmp.gt.f32.partialorder %v82, 0.0
  %vm103 = vcmp.gt.f32.partialorder %v85, 0.0
  %vm104 = vcmp.gt.f32.partialorder %v88, 0.0
  %v105 = vrsqrt.pop %v43
  %v106 = vrsqrt.pop %v46
  %v107 = vrsqrt.pop %v49
  %v108 = vrsqrt.pop %v52
  %v109 = vrsqrt.pop %v55
  %v110 = vrsqrt.pop %v58
  %v111 = vrsqrt.pop %v61
  %v112 = vrsqrt.pop %v64
  %v113 = vrsqrt.pop %v67
  %v114 = vrsqrt.pop %v70
  %v115 = vrsqrt.pop %v73
  %v116 = vrsqrt.pop %v76
  %v117 = vrsqrt.pop %v79
  %v118 = vrsqrt.pop %v82
  %v119 = vrsqrt.pop %v85
  %v120 = vrsqrt.pop %v88
  %v121 = vsel %vm89, %v105, 1.0
  %v122 = vsel %vm90, %v106, 1.0
  %v123 = vsel %vm91, %v107, 1.0
  %v124 = vsel %vm92, %v108, 1.0
  %v125 = vsel %vm93, %v109, 1.0
  %v126 = vsel %vm94, %v110, 1.0
  %v127 = vsel %vm95, %v111, 1.0
  %v128 = vsel %vm96, %v112, 1.0
  %v129 = vsel %vm97, %v113, 1.0
  %v130 = vsel %vm98, %v114, 1.0
  %v131 = vsel %vm99, %v115, 1.0
  %v132 = vsel %vm100, %v116, 1.0
  %v133 = vsel %vm101, %v117, 1.0
  %v134 = vsel %vm102, %v118, 1.0
  %v135 = vsel %vm103, %v119, 1.0
  %v136 = vsel %vm104, %v120, 1.0
  %v137 = vmul.f32 %v8, %v121
  %v138 = vmul.f32 %v9, %v122
  %v139 = vmul.f32 %v10, %v123
  %v140 = vmul.f32 %v11, %v124
  %v141 = vmul.f32 %v12, %v125
  %v142 = vmul.f32 %v13, %v126
  %v143 = vmul.f32 %v14, %v127
  %v144 = vmul.f32 %v15, %v128
  %v145 = vmul.f32 %v16, %v129
  %v146 = vmul.f32 %v17, %v130
  %v147 = vmul.f32 %v18, %v131
  %v148 = vmul.f32 %v19, %v132
  %v149 = vmul.f32 %v20, %v133
  %v150 = vmul.f32 %v21, %v134
  %v151 = vmul.f32 %v22, %v135
  %v152 = vmul.f32 %v23, %v136
  %153 = vst.msk [vmem:[%s1] sm:$0xff] %vm40, %v137
  %154 = vst.msk [vmem:[%s1 + $0x8] sm:$0xff] %vm40, %v138
  %155 = vst.msk [vmem:[%s1 + $0x10] sm:$0xff] %vm40, %v139
  %156 = vst.msk [vmem:[%s1 + $0x18] sm:$0xff] %vm40, %v140
  %157 = vst.msk [vmem:[%s1 + $0x20] sm:$0xff] %vm40, %v141
  %158 = vst.msk [vmem:[%s1 + $0x28] sm:$0xff] %vm40, %v142
  %159 = vst.msk [vmem:[%s1 + $0x30] sm:$0xff] %vm40, %v143
  %160 = vst.msk [vmem:[%s1 + $0x38] sm:$0xff] %vm40, %v144
  %161 = vst.msk [vmem:[%s1 + $0x40] sm:$0xff] %vm40, %v145
  %162 = vst.msk [vmem:[%s1 + $0x48] sm:$0xff] %vm40, %v146
  %163 = vst.msk [vmem:[%s1 + $0x50] sm:$0xff] %vm40, %v147
  %164 = vst.msk [vmem:[%s1 + $0x58] sm:$0xff] %vm40, %v148
  %165 = vst.msk [vmem:[%s1 + $0x60] sm:$0xff] %vm40, %v149
  %166 = vst.msk [vmem:[%s1 + $0x68] sm:$0xff] %vm40, %v150
  %167 = vst.msk [vmem:[%s1 + $0x70] sm:$0xff] %vm40, %v151
  %168 = vst.msk [vmem:[%s1 + $0x78] sm:$0xff] %vm40, %v152
  // Predicated region
  $region6: #{tpu_custom_call.1} parent=0 // pred_check
    _
  $region7: #{tpu_custom_call.1} parent=0 // pred_check_branch
    %170 = sbr.rel (0) target = $region9
  $region8: #{tpu_custom_call.1} parent=0 // pred_region
    _
  $region9: #{tpu_custom_call.1} parent=0 // pred_fallthru
    _
  // Predicated region
  $region10: #{tpu_custom_call.1} parent=0 // pred_check
    _
  $region11: #{tpu_custom_call.1} parent=0 // pred_check_branch
    %172 = sbr.rel (0) target = $region13
  $region12: #{tpu_custom_call.1} parent=0 // pred_region
    _
  $region13: #{tpu_custom_call.1} parent=0 // pred_fallthru
    _

</llo_original>
